<compile_context>
chip_gen: v7x
topology: tpu7x:2x2x1
jax: 0.10.0
libtpu: 0.0.40
codegen_flags: <defaults>
</compile_context>

<pallas_src>
import math
import functools

import jax
import jax.numpy as jnp
from jax.experimental import pallas as pl
from jax.experimental.pallas import tpu as pltpu


def _round_up(x, m):
    return (x + m - 1) // m * m


def _vmem_capacity_bytes():
    try:
        return int(pltpu.get_tpu_info().vmem_capacity_bytes)
    except Exception:
        return 64 << 20  # conservative default (v7x per-core VMEM)


def _vmem_estimate(tb, tc, E, emb_bytes, w_bytes, out_bytes):
    return (2 * E * tc * w_bytes         # double-buffered weight tile
            + 2 * tb * E * emb_bytes     # double-buffered embeddings tile
            + 2 * tb * 128 * 4           # labels tile (lane-padded int32)
            + 2 * tb * tc * out_bytes    # double-buffered output tile
            + 4 * tb * tc * 4)           # f32 matmul result + epilogue temps


def _choose_tiles(B, C, E, emb_bytes, w_bytes, out_bytes, vmem_cap):
    # Batch tile covers the whole batch (up to a VMEM-dependent cap) so each
    # (E, tc) weight block is pushed through the MXU exactly once and the
    # embeddings are fetched once per class block.
    tb_cap = 1024 if vmem_cap >= (96 << 20) else 512   # v5e/v6e: 1024; v7x: 512
    tb = min(_round_up(B, 8), tb_cap)
    # Scoped-VMEM budget with headroom below physical capacity.
    budget = (vmem_cap * 3) // 5
    # Class tile: largest lane-dense multiple of 128 (<= 2048) that fits.
    tc = min(2048, _round_up(C, 128))
    while tc > 128 and _vmem_estimate(tb, tc, E, emb_bytes, w_bytes,
                                      out_bytes) > budget:
        tc -= 128
    return tb, tc


def _arcface_kernel(emb_ref, w_ref, label_ref, out_ref, *,
                    cos_m, sin_m, threshold, mm, s):
    # --- hot path: MXU matmul with f32 accumulation.  emb_ref already carries
    # the per-row weight L2 norms (folded in), so w_ref is the RAW weight tile.
    cos_theta = jnp.dot(emb_ref[...], w_ref[...],
                        preferred_element_type=jnp.float32)       # (tb, tc) f32
    cos_theta = jnp.clip(cos_theta, -1.0, 1.0)

    # --- additive angular margin (f32 epilogue on the VPU/EUP) ---
    sin_theta = jnp.sqrt(jnp.maximum(1.0 - cos_theta * cos_theta, 1e-9))
    cos_theta_m = cos_theta * cos_m - sin_theta * sin_m
    cos_theta_m = jnp.where(cos_theta > threshold, cos_theta_m, cos_theta - mm)

    # --- select the margin-adjusted logit for each row's true class.
    # Subtract the class-block offset from the (tb, 1) labels rather than
    # adding it to the (tb, tc) iota (saves a full-tile int32 add).
    tb, tc = out_ref.shape
    local_labels = label_ref[...] - pl.program_id(0) * tc          # (tb, 1)
    class_ids = jax.lax.broadcasted_iota(jnp.int32, (tb, tc), 1)   # (tb, tc)
    out = jnp.where(class_ids == local_labels, cos_theta_m, cos_theta) * s
    out_ref[...] = out.astype(out_ref.dtype)


def arcface_forward(embeddings, identity_weights, label, *, margin, s,
                    out_dtype=jnp.float32, matmul_dtype=None):
    """Pallas ArcFace forward.

    embeddings: (B, E), identity_weights: (E, C), label: (B,) int.
    Returns (B, C) scaled logits in `out_dtype`.

    matmul_dtype=None streams the raw weights directly (no full-matrix cast);
    pass jnp.bfloat16 for the reduced-precision MXU path (for repeated calls,
    cache the cast weight copy outside and pass it as `identity_weights`).
    """
    B, E = embeddings.shape
    E2, C = identity_weights.shape
    assert E == E2

    cos_m = math.cos(margin)
    sin_m = math.sin(margin)
    threshold = math.cos(math.pi - margin)
    mm = math.sin(math.pi - margin) * margin

    # F.normalize(w, p=2) with default dim=1 on an (E, C) matrix divides each
    # ROW by its L2 norm.  That scale depends only on the embedding index e, so
    # it is folded into the embeddings:
    #   sum_e emb[b,e] * (w[e,c] / n[e]) == sum_e (emb[b,e] / n[e]) * w[e,c]
    # Only an (E,)-sized vector is computed and the raw weight matrix is
    # streamed straight into the kernel (no per-call rewrite of E x C data).
    w32sq_sum = jnp.sum(jnp.square(identity_weights.astype(jnp.float32)), axis=1)
    inv_norm = 1.0 / jnp.maximum(jnp.sqrt(w32sq_sum), 1e-12)       # (E,)
    emb_scaled = embeddings.astype(jnp.float32) * inv_norm[None, :]

    if matmul_dtype is None:
        w_k = identity_weights
        emb_k = emb_scaled.astype(identity_weights.dtype)
    else:
        # Optional reduced-precision MXU path (casts the full weight matrix;
        # cache this copy across calls if used repeatedly).
        w_k = identity_weights.astype(matmul_dtype)
        emb_k = emb_scaled.astype(matmul_dtype)

    label2d = label.astype(jnp.int32).reshape(B, 1)

    # Tile sizes + scoped-VMEM limit derived from the device's VMEM capacity.
    vmem_cap = _vmem_capacity_bytes()
    emb_bytes = jnp.dtype(emb_k.dtype).itemsize
    w_bytes = jnp.dtype(w_k.dtype).itemsize
    out_bytes = jnp.dtype(out_dtype).itemsize
    tb, tc = _choose_tiles(B, C, E, emb_bytes, w_bytes, out_bytes, vmem_cap)

    vmem_est = _vmem_estimate(tb, tc, E, emb_bytes, w_bytes, out_bytes)
    vmem_limit = int(min(max(vmem_est + (8 << 20), 32 << 20),
                         vmem_cap - (4 << 20)))

    # Grid: class axis OUTER, batch axis INNER -> each (E, tc) weight block is
    # fetched from HBM and pushed into the MXU exactly once while the small
    # (scaled) embeddings tile is re-streamed per class block.  Partial edge
    # blocks are handled by Pallas (no padding copies).
    grid = (pl.cdiv(C, tc), pl.cdiv(B, tb))

    cost = pl.CostEstimate(
        flops=2 * B * C * E,
        transcendentals=0,
        bytes_accessed=(E * C * w_bytes + grid[0] * B * E * emb_bytes
                        + B * C * out_bytes + B * 4),
    )

    kernel = functools.partial(
        _arcface_kernel, cos_m=cos_m, sin_m=sin_m, threshold=threshold,
        mm=mm, s=float(s))

    out = pl.pallas_call(
        kernel,
        out_shape=jax.ShapeDtypeStruct((B, C), out_dtype),
        grid_spec=pltpu.PrefetchScalarGridSpec(
            num_scalar_prefetch=0,
            grid=grid,
            in_specs=[
                pl.BlockSpec((tb, E), lambda c, b: (b, 0)),   # scaled embeddings
                pl.BlockSpec((E, tc), lambda c, b: (0, c)),   # raw weight tile (resident across inner batch axis)
                pl.BlockSpec((tb, 1), lambda c, b: (b, 0)),   # labels
            ],
            out_specs=pl.BlockSpec((tb, tc), lambda c, b: (b, c)),
        ),
        compiler_params=pltpu.CompilerParams(
            dimension_semantics=("parallel", "parallel"),
            vmem_limit_bytes=vmem_limit),
        cost_estimate=cost,
    )(emb_k, w_k, label2d)

    return out


# ----------------------------- testing helpers -------------------------------

def _init_identity_weights(key, embeddings_size, class_nums):
    """Deterministic replica of:
       torch.Tensor(E, C).uniform_(-1, 1).renorm_(2, 1, 1e-5).mul_(1e5)"""
    w = jax.random.uniform(key, (embeddings_size, class_nums),
                           minval=-1.0, maxval=1.0, dtype=jnp.float32)
    # renorm over dim=1: each column (length E) rescaled to norm <= 1e-5
    col_norm = jnp.sqrt(jnp.sum(w * w, axis=0, keepdims=True))
    scale = jnp.where(col_norm > 1e-5, 1e-5 / (col_norm + 1e-7), 1.0)
    return w * scale * 1e5


def _arcface_reference(embeddings, identity_weights, label, *, margin, s,
                       matmul_dtype=jnp.float32, fold_norm=False):
    cos_m = math.cos(margin)
    sin_m = math.sin(margin)
    threshold = math.cos(math.pi - margin)
    mm = math.sin(math.pi - margin) * margin
    w32 = identity_weights.astype(jnp.float32)
    norm = jnp.maximum(jnp.sqrt(jnp.sum(w32 * w32, axis=1)), 1e-12)   # (E,)
    if fold_norm:   # mirrors the kernel's norm-folded reduced-precision path
        emb = (embeddings.astype(jnp.float32) / norm[None, :]).astype(matmul_dtype)
        w = identity_weights.astype(matmul_dtype)
    else:           # exact module semantics
        emb = embeddings.astype(matmul_dtype)
        w = (w32 / norm[:, None]).astype(matmul_dtype)
    cos_theta = jnp.dot(emb, w, preferred_element_type=jnp.float32,
                        precision=jax.lax.Precision.HIGHEST)
    cos_theta = jnp.clip(cos_theta, -1.0, 1.0)
    sin_theta = jnp.sqrt(jnp.maximum(1.0 - cos_theta ** 2, 1e-9))
    cos_theta_m = cos_theta * cos_m - sin_theta * sin_m
    cos_theta_m = jnp.where(cos_theta > threshold, cos_theta_m, cos_theta - mm)
    one_hot = jax.nn.one_hot(label, cos_theta.shape[1], dtype=jnp.float32)
    return (one_hot * cos_theta_m + (1.0 - one_hot) * cos_theta) * s


def _assert_close(a, b, atol, name="", max_bad_frac=1e-3):
    # Allow a tiny fraction of deviating elements: fp-noise can flip the
    # discontinuous (cos > threshold) branch for values sitting exactly on it.
    diff = jnp.abs(a.astype(jnp.float32) - b.astype(jnp.float32))
    bad = float(jnp.mean((diff > atol).astype(jnp.float32)))
    assert bad <= max_bad_frac, (
        f"{name}: {bad * 100:.3f}% of elements exceed atol={atol} "
        f"(max diff {float(jnp.max(diff)):.3e})")


if __name__ == "__main__":
    # Small shapes: batch=16, embeddings_size=32, class_nums=256
    B, E, C = 16, 32, 256
    margin, s = 0.5, 64.0

    key = jax.random.PRNGKey(0)
    k_w, k_e, k_l = jax.random.split(key, 3)

    identity_weights = _init_identity_weights(k_w, E, C)
    embeddings = jax.random.normal(k_e, (B, E), dtype=jnp.float32)
    label = jax.random.randint(k_l, (B,), 0, C, dtype=jnp.int32)

    # 1) Default path: raw f32 weights streamed, row norms folded into the
    #    embeddings -> compare against exact module-semantics reference.
    out_f32 = arcface_forward(embeddings, identity_weights, label,
                              margin=margin, s=s)
    out_f32 = jax.block_until_ready(out_f32)
    ref_f32 = _arcface_reference(embeddings, identity_weights, label,
                                 margin=margin, s=s)
    assert out_f32.shape == (B, C)
    _assert_close(out_f32, ref_f32, atol=2e-3, name="f32")

    # 2) Optional bf16 MXU path vs. a matched-precision (norm-folded) reference.
    out_bf16 = arcface_forward(embeddings, identity_weights, label,
                               margin=margin, s=s, matmul_dtype=jnp.bfloat16)
    out_bf16 = jax.block_until_ready(out_bf16)
    ref_bf16 = _arcface_reference(embeddings, identity_weights, label,
                                  margin=margin, s=s,
                                  matmul_dtype=jnp.bfloat16, fold_norm=True)
    _assert_close(out_bf16, ref_bf16, atol=5e-2, name="bf16")

    print("KERNEL_OK")
</pallas_src>

<mosaic_0001>
module attributes {stable_mosaic.version = 11 : i64} {
  func.func @_arcface_kernel(%arg0: i32, %arg1: i32, %arg2: memref<16x32xf32, #tpu.memory_space<vmem>>, %arg3: memref<32x256xf32, #tpu.memory_space<vmem>>, %arg4: memref<16x1xi32, #tpu.memory_space<vmem>>, %arg5: memref<16x256xf32, #tpu.memory_space<vmem>>) attributes {dimension_semantics = [#tpu.dimension_semantics<parallel>, #tpu.dimension_semantics<parallel>], iteration_bounds = array<i64: 1, 1>, scalar_prefetch = 0 : i64, scratch_operands = 0 : i64, tpu.core_type = #tpu.core_type<tc>, window_params = [{transform_indices = @transform_0, window_bounds = array<i64: 16, 32>}, {transform_indices = @transform_1, window_bounds = array<i64: 32, 256>}, {transform_indices = @transform_2, window_bounds = array<i64: 16, 1>}, {transform_indices = @transform_3, window_bounds = array<i64: 16, 256>}]} {
    %c0 = arith.constant 0 : index
    %c0_0 = arith.constant 0 : index
    %0 = vector.load %arg2[%c0, %c0_0] : memref<16x32xf32, #tpu.memory_space<vmem>>, vector<16x32xf32>
    %c0_1 = arith.constant 0 : index
    %c0_2 = arith.constant 0 : index
    %1 = vector.load %arg3[%c0_1, %c0_2] : memref<32x256xf32, #tpu.memory_space<vmem>>, vector<32x256xf32>
    %cst = arith.constant dense<0.000000e+00> : vector<16x256xf32>
    %2 = tpu.matmul %0, %1, %cst {dimension_numbers = #tpu.dot_dimension_numbers<[1], [0], [0], [1], [0, 0, 1, 1], [], []>} : vector<16x32xf32>, vector<32x256xf32>, vector<16x256xf32> -> vector<16x256xf32>
    %cst_3 = arith.constant -1.000000e+00 : f32
    %cst_4 = arith.constant 1.000000e+00 : f32
    %3 = vector.broadcast %cst_3 : f32 to vector<16x256xf32>
    %4 = arith.maximumf %3, %2 : vector<16x256xf32>
    %5 = vector.broadcast %cst_4 : f32 to vector<16x256xf32>
    %6 = arith.minimumf %5, %4 : vector<16x256xf32>
    %7 = arith.mulf %6, %6 : vector<16x256xf32>
    %cst_5 = arith.constant 1.000000e+00 : f32
    %8 = vector.broadcast %cst_5 : f32 to vector<16x256xf32>
    %9 = arith.subf %8, %7 : vector<16x256xf32>
    %cst_6 = arith.constant 9.99999971E-10 : f32
    %10 = vector.broadcast %cst_6 : f32 to vector<16x256xf32>
    %11 = arith.maximumf %9, %10 : vector<16x256xf32>
    %12 = math.sqrt %11 : vector<16x256xf32>
    %cst_7 = arith.constant 0.87758255 : f32
    %13 = vector.broadcast %cst_7 : f32 to vector<16x256xf32>
    %14 = arith.mulf %6, %13 : vector<16x256xf32>
    %cst_8 = arith.constant 0.47942555 : f32
    %15 = vector.broadcast %cst_8 : f32 to vector<16x256xf32>
    %16 = arith.mulf %12, %15 : vector<16x256xf32>
    %17 = arith.subf %14, %16 : vector<16x256xf32>
    %cst_9 = arith.constant -0.87758255 : f32
    %18 = vector.broadcast %cst_9 : f32 to vector<16x256xf32>
    %19 = arith.cmpf ogt, %6, %18 : vector<16x256xf32>
    %cst_10 = arith.constant 0.239712775 : f32
    %20 = vector.broadcast %cst_10 : f32 to vector<16x256xf32>
    %21 = arith.subf %6, %20 : vector<16x256xf32>
    %22 = arith.select %19, %17, %21 : vector<16x256xi1>, vector<16x256xf32>
    %c0_11 = arith.constant 0 : index
    %c0_12 = arith.constant 0 : index
    %23 = vector.load %arg4[%c0_11, %c0_12] : memref<16x1xi32, #tpu.memory_space<vmem>>, vector<16x1xi32>
    %c256_i32 = arith.constant 256 : i32
    %24 = arith.muli %arg0, %c256_i32 : i32
    %25 = vector.broadcast %24 : i32 to vector<16x1xi32>
    %26 = arith.subi %23, %25 : vector<16x1xi32>
    %27 = tpu.iota {dimensions = array<i32: 1>} : vector<16x256xi32>
    %28 = vector.broadcast %26 : vector<16x1xi32> to vector<16x256xi32>
    %29 = arith.cmpi eq, %27, %28 : vector<16x256xi32>
    %30 = arith.select %29, %22, %6 : vector<16x256xi1>, vector<16x256xf32>
    %cst_13 = arith.constant 6.400000e+01 : f32
    %31 = vector.broadcast %cst_13 : f32 to vector<16x256xf32>
    %32 = arith.mulf %30, %31 : vector<16x256xf32>
    %c0_14 = arith.constant 0 : index
    %c0_15 = arith.constant 0 : index
    %33 = vector.load %arg5[%c0_14, %c0_15] : memref<16x256xf32, #tpu.memory_space<vmem>>, vector<16x256xf32>
    tpu.vector_store %arg5[%c0_14, %c0_15], %32 {strides = array<i32>} : memref<16x256xf32, #tpu.memory_space<vmem>>, vector<16x256xf32>,
    return
  }
  func.func @transform_0(%arg0: i32, %arg1: i32) -> (i32, i32) {
    %c0_i32 = arith.constant 0 : i32
    %c0_i32_0 = arith.constant 0 : i32
    return %arg1, %c0_i32 : i32, i32
  }
  func.func @transform_1(%arg0: i32, %arg1: i32) -> (i32, i32) {
    %c0_i32 = arith.constant 0 : i32
    %c0_i32_0 = arith.constant 0 : i32
    return %c0_i32, %arg0 : i32, i32
  }
  func.func @transform_2(%arg0: i32, %arg1: i32) -> (i32, i32) {
    %c0_i32 = arith.constant 0 : i32
    %c0_i32_0 = arith.constant 0 : i32
    return %arg1, %c0_i32 : i32, i32
  }
  func.func @transform_3(%arg0: i32, %arg1: i32) -> (i32, i32) {
    %c0_i32 = arith.constant 0 : i32
    return %arg1, %arg0 : i32, i32
  }
}

</mosaic_0001>

<llo_original>
// kernel: tpu_custom_call.1
$region0: #{tpu_custom_call.1}
  #allocation0 [shape = 'u32[]', space=smem, size = 0x4, offset = 0x4, fixed_abs, tag = 'smem constant byte address 0x4 - core index']
  #allocation1 [shape = 'u32[144,128]{1,0:T(1,128)}', space=vmem, size = 0x12000, scoped, tag = 'internal scratch']
  %s0 = inlined_call_operand.vmem [shape: f32[16,32], index: 0, kind: input, shape index: {}]
  %s1 = inlined_call_operand.hbm [shape: f32[32,256], index: 1, kind: input, shape index: {}]
  %s2 = inlined_call_operand.vmem [shape: s32[16,1], index: 2, kind: input, shape index: {}]
  %s3 = inlined_call_operand.hbm [shape: f32[16,256], index: 3, kind: output, shape index: {}]
  %s4 = sld [smem:[#allocation0]]
  $region26: #{tpu_custom_call.1} parent=0
    _
  %s6 = ssub.s32 1, %s4
  %s7 = scalar_select 0, %s6, %s4
  $region1: #{tpu_custom_call.1} parent=0
    #allocation2 [shape = 'u8[32768]{0}', space=vmem, size = 0x8000, scoped, tag = 'input window, operand 1, single buffered']
    #allocation3 [shape = 's32[1]{0}', space=sflag, size = 0x4, scoped, tag = 'scoped memory for tpu_custom_call.1']
    #allocation4 [shape = 's32[1]{0}', space=sflag, size = 0x4, scoped, tag = 'scoped memory for tpu_custom_call.1']
    #allocation5 [shape = 'u8[16384]{0}', space=vmem, size = 0x4000, scoped, tag = 'output window, operand 0, single buffered']
    %8 = vsyncpa [#allocation3], 0
    %9 = vsyncpa [#allocation4], 0
    // Predicated region
    $region2: #{tpu_custom_call.1} parent=1 // pred_check
      _
    $region3: #{tpu_custom_call.1} parent=1 // pred_check_branch
      %11 = sbr.rel (0) target = $region5
    $region4: #{tpu_custom_call.1} parent=1 // pred_region
      _
    $region5: #{tpu_custom_call.1} parent=1 // pred_fallthru
      _
    // Predicated region
    $region6: #{tpu_custom_call.1} parent=1 // pred_check
      _
    $region7: #{tpu_custom_call.1} parent=1 // pred_check_branch
      %13 = sbr.rel (0) target = $region9
    $region8: #{tpu_custom_call.1} parent=1 // pred_region
      %s15 = ssub.s32 1024, 1024
      %16 = vsyncadd [#allocation3], %s15
      %s17 = sshll.u32 [#allocation2], 4
      %s18 = int_to_ptr.vmem [resolvable:$true] %s17
      %23 = dma.hbm_to_vmem [thread:$0]  %s1, 1024, %s18, [#allocation3], 256, 256, 16
    $region9: #{tpu_custom_call.1} parent=1 // pred_fallthru
      _
    // Predicated region
    $region10: #{tpu_custom_call.1} parent=1 // pred_check
      _
    $region11: #{tpu_custom_call.1} parent=1 // pred_check_branch
      %25 = sbr.rel (0) target = $region13
    $region12: #{tpu_custom_call.1} parent=1 // pred_region
      _
    $region13: #{tpu_custom_call.1} parent=1 // pred_fallthru
      _
    // Predicated region
    $region14: #{tpu_custom_call.1} parent=1 // pred_check
      _
    $region15: #{tpu_custom_call.1} parent=1 // pred_check_branch
      %27 = sbr.rel (0) target = $region17
    $region16: #{tpu_custom_call.1} parent=1 // pred_region
      %28 = dma.done [#allocation3], 1024
    $region17: #{tpu_custom_call.1} parent=1 // pred_fallthru
      _
    %v29 = vld [vmem:[%s0] sm:$0xff]
    %v30 = vld [vmem:[%s0 + $0x8] sm:$0xff]
    %v31 = vld [vmem:[#allocation2] sm:$0xff]
    %v32 = vld [vmem:[#allocation2 + $0x8] sm:$0xff]
    %v33 = vld [vmem:[#allocation2 + $0x10] sm:$0xff]
    %v34 = vld [vmem:[#allocation2 + $0x18] sm:$0xff]
    %v35 = vld [vmem:[#allocation2 + $0x20] sm:$0xff]
    %v36 = vld [vmem:[#allocation2 + $0x28] sm:$0xff]
    %v37 = vld [vmem:[#allocation2 + $0x30] sm:$0xff]
    %v38 = vld [vmem:[#allocation2 + $0x38] sm:$0xff]
    %vm39 = vcmask 261120
    %v41 = vsel %vm39, %v29, 0
    %v44 = vsel %vm39, %v30, 0
    %46 = vmatprep.subr.mxu0 %v32
    %47 = vmatpush1.msra.mxu0 %v31
    %48 = vmatprep.subr.mxu0 %v34
    %49 = vmatpush1.msra.mxu0 %v33
    %50 = vmatprep.subr.mxu0 %v36
    %51 = vmatpush1.msra.mxu0 %v35
    %52 = vmatprep.subr.mxu0 %v38
    %53 = vmatpush1.msra.mxu0 %v37
    %54 = vmatprep.subr.mxu0 0.0
    %55 = vmatpush1.msra.mxu0 0.0
    %56 = vmatprep.subr.mxu0 0.0
    %57 = vmatpush1.msra.mxu0 0.0
    %58 = vmatprep.subr.mxu0 0.0
    %59 = vmatpush1.msra.mxu0 0.0
    %60 = vmatprep.subr.mxu0 0.0
    %61 = vmatpush1.msra.mxu0 0.0
    %62 = vmatprep.subr.mxu0 0.0
    %63 = vmatpush1.msra.mxu0 0.0
    %64 = vmatprep.subr.mxu0 0.0
    %65 = vmatpush1.msra.mxu0 0.0
    %66 = vmatprep.subr.mxu0 0.0
    %67 = vmatpush1.msra.mxu0 0.0
    %68 = vmatprep.subr.mxu0 0.0
    %69 = vmatpush1.msra.mxu0 0.0
    %70 = vmatprep.subr.mxu0 0.0
    %71 = vmatpush1.msra.mxu0 0.0
    %72 = vmatprep.subr.mxu0 0.0
    %73 = vmatpush1.msra.mxu0 0.0
    %74 = vmatprep.subr.mxu0 0.0
    %75 = vmatpush1.msra.mxu0 0.0
    %76 = vmatprep.subr.mxu0 0.0
    %77 = vmatpush1.msra.mxu0 0.0
    %78 = vmatprep.subr.mxu0 0.0
    %79 = vmatpush1.msra.mxu0 0.0
    %80 = vmatprep.subr.mxu0 0.0
    %81 = vmatpush1.msra.mxu0 0.0
    %82 = vmatprep.subr.mxu0 0.0
    %83 = vmatpush1.msra.mxu0 0.0
    %84 = vmatprep.subr.mxu0 0.0
    %85 = vmatpush1.msra.mxu0 0.0
    %86 = vmatprep.subr.mxu0 0.0
    %87 = vmatpush1.msra.mxu0 0.0
    %88 = vmatprep.subr.mxu0 0.0
    %89 = vmatpush1.msra.mxu0 0.0
    %90 = vmatprep.subr.mxu0 0.0
    %91 = vmatpush1.msra.mxu0 0.0
    %92 = vmatprep.subr.mxu0 0.0
    %93 = vmatpush1.msra.mxu0 0.0
    %94 = vmatprep.subr.mxu0 0.0
    %95 = vmatpush1.msra.mxu0 0.0
    %96 = vmatprep.subr.mxu0 0.0
    %97 = vmatpush1.msra.mxu0 0.0
    %98 = vmatprep.subr.mxu0 0.0
    %99 = vmatpush1.msra.mxu0 0.0
    %100 = vmatprep.subr.mxu0 0.0
    %101 = vmatpush1.msra.mxu0 0.0
    %102 = vmatprep.subr.mxu0 0.0
    %103 = vmatpush1.msra.mxu0 0.0
    %104 = vmatprep.subr.mxu0 0.0
    %105 = vmatpush1.msra.mxu0 0.0
    %106 = vmatprep.subr.mxu0 0.0
    %107 = vmatpush1.msra.mxu0 0.0
    %108 = vmatprep.subr.mxu0 0.0
    %109 = vmatpush1.msra.mxu0 0.0
    %110 = vmatprep.mubr.f32.mxu0 0.0
    %111 = vmatmul.mubr.f32.gmra.mrb[0].mxu0 %v41
    %v112 = vpop.f32.mrb[0].mxu0
    %v113 = vadd.f32 0.0, %v112
    %v114 = vpop.f32.mrb[0].mxu0
    %v115 = vadd.f32 0.0, %v114
    %116 = vmatprep.mubr.f32.mxu0 0.0
    %117 = vmatmul.mubr.f32.gmra.mrb[0].mxu0 %v44
    %v118 = vpop.f32.mrb[0].mxu0
    %v119 = vadd.f32 0.0, %v118
    %v120 = vpop.f32.mrb[0].mxu0
    %v121 = vadd.f32 0.0, %v120
    %122 = vdwg.mxu0
    %v123 = vmax.f32 %v113, -1.0
    %v124 = vmax.f32 %v115, -1.0
    %v125 = vmax.f32 %v119, -1.0
    %v126 = vmax.f32 %v121, -1.0
    %v127 = vmin.f32 %v123, 1.0
    %v128 = vmin.f32 %v124, 1.0
    %v129 = vmin.f32 %v125, 1.0
    %v130 = vmin.f32 %v126, 1.0
    %v131 = vmul.f32 %v127, %v127
    %v132 = vmul.f32 %v128, %v128
    %v133 = vmul.f32 %v129, %v129
    %v134 = vmul.f32 %v130, %v130
    %v135 = vsub.f32 1.0, %v131
    %v136 = vsub.f32 1.0, %v132
    %v137 = vsub.f32 1.0, %v133
    %v138 = vsub.f32 1.0, %v134
    %v139 = vmax.f32 %v135, 1e-09
    %v140 = vmax.f32 %v136, 1e-09
    %v141 = vmax.f32 %v137, 1e-09
    %v142 = vmax.f32 %v138, 1e-09
    %v143 = vrsqrt.pop %v139
    %v144 = vmul.f32 %v139, %v143
    %vm145 = vcmp.eq.f32.partialorder %v139, inf
    %v146 = vsel %vm145, %v139, %v144
    %vm147 = vcmp.eq.f32.partialorder %v139, 0.0
    %v148 = vand.u32 %v139, 2147483648
    %v149 = vsel %vm147, %v148, %v146
    %v150 = vrsqrt.pop %v140
    %v151 = vmul.f32 %v140, %v150
    %vm152 = vcmp.eq.f32.partialorder %v140, inf
    %v153 = vsel %vm152, %v140, %v151
    %vm154 = vcmp.eq.f32.partialorder %v140, 0.0
    %v155 = vand.u32 %v140, 2147483648
    %v156 = vsel %vm154, %v155, %v153
    %v157 = vrsqrt.pop %v141
    %v158 = vmul.f32 %v141, %v157
    %vm159 = vcmp.eq.f32.partialorder %v141, inf
    %v160 = vsel %vm159, %v141, %v158
    %vm161 = vcmp.eq.f32.partialorder %v141, 0.0
    %v162 = vand.u32 %v141, 2147483648
    %v163 = vsel %vm161, %v162, %v160
    %v164 = vrsqrt.pop %v142
    %v165 = vmul.f32 %v142, %v164
    %vm166 = vcmp.eq.f32.partialorder %v142, inf
    %v167 = vsel %vm166, %v142, %v165
    %vm168 = vcmp.eq.f32.partialorder %v142, 0.0
    %v169 = vand.u32 %v142, 2147483648
    %v170 = vsel %vm168, %v169, %v167
    %v171 = vmul.f32 %v127, 0.87758255
    %v172 = vmul.f32 %v128, 0.87758255
    %v173 = vmul.f32 %v129, 0.87758255
    %v174 = vmul.f32 %v130, 0.87758255
    %v175 = vmul.f32 %v149, 0.47942555
    %v176 = vmul.f32 %v156, 0.47942555
    %v177 = vmul.f32 %v163, 0.47942555
    %v178 = vmul.f32 %v170, 0.47942555
    %v179 = vsub.f32 %v171, %v175
    %v180 = vsub.f32 %v172, %v176
    %v181 = vsub.f32 %v173, %v177
    %v182 = vsub.f32 %v174, %v178
    %vm183 = vcmp.gt.f32.partialorder %v127, -0.87758255
    %vm184 = vcmp.gt.f32.partialorder %v128, -0.87758255
    %vm185 = vcmp.gt.f32.partialorder %v129, -0.87758255
    %vm186 = vcmp.gt.f32.partialorder %v130, -0.87758255
    %v187 = vsub.f32 %v127, 0.23971277
    %v188 = vsub.f32 %v128, 0.23971277
    %v189 = vsub.f32 %v129, 0.23971277
    %v190 = vsub.f32 %v130, 0.23971277
    %v191 = vsel %vm183, %v179, %v187
    %v192 = vsel %vm184, %v180, %v188
    %v193 = vsel %vm185, %v181, %v189
    %v194 = vsel %vm186, %v182, %v190
    %v195 = vld [vmem:[%s2] sm:$0xff]
    %v196 = vld [vmem:[%s2 + $0x8] sm:$0xff]
    %s197 = smul.u32 0, 256
    %v198 = vstv %s197
    %v199 = vsub.s32 %v195, %v198
    %v200 = vsub.s32 %v196, %v198
    %v201 = vlaneseq
    %v202 = vand.u32 %v201, 127
    %v203 = vadd.s32 %v202, 128
    %204 = vset.pattern.permute.xlu0 0
    %205 = vperm.xlu0 %204, %v199
    %v206 = vpop.permute.xlu0 %205
    %207 = vset.pattern.permute.xlu0 0
    %208 = vperm.xlu0 %207, %v200
    %v209 = vpop.permute.xlu0 %208
    %vm210 = vcmp.eq.s32.totalorder %v202, %v206
    %vm211 = vcmp.eq.s32.totalorder %v203, %v206
    %vm212 = vcmp.eq.s32.totalorder %v202, %v209
    %vm213 = vcmp.eq.s32.totalorder %v203, %v209
    %v214 = vsel %vm210, %v191, %v127
    %v215 = vsel %vm211, %v192, %v128
    %v216 = vsel %vm212, %v193, %v129
    %v217 = vsel %vm213, %v194, %v130
    %v218 = vmul.f32 %v214, 64.0
    %v219 = vmul.f32 %v215, 64.0
    %v220 = vmul.f32 %v216, 64.0
    %v221 = vmul.f32 %v217, 64.0
    %222 = vst [vmem:[#allocation5] sm:$0xff] %v218
    %223 = vst [vmem:[#allocation5 + $0x8] sm:$0xff] %v219
    %224 = vst [vmem:[#allocation5 + $0x10] sm:$0xff] %v220
    %225 = vst [vmem:[#allocation5 + $0x18] sm:$0xff] %v221
    // Predicated region
    $region18: #{tpu_custom_call.1} parent=1 // pred_check
      _
    $region19: #{tpu_custom_call.1} parent=1 // pred_check_branch
      %227 = sbr.rel (0) target = $region21
    $region20: #{tpu_custom_call.1} parent=1 // pred_region
      %s229 = ssub.s32 512, 512
      %230 = vsyncadd [#allocation4], %s229
      %s231 = sshll.u32 [#allocation5], 4
      %s232 = int_to_ptr.vmem [resolvable:$true] %s231
      %237 = dma.vmem_to_hbm [thread:$0]  %s232, 512, %s3, [#allocation4], 256, 256, 16
    $region21: #{tpu_custom_call.1} parent=1 // pred_fallthru
      _
    // Predicated region
    $region22: #{tpu_custom_call.1} parent=1 // pred_check
      _
    $region23: #{tpu_custom_call.1} parent=1 // pred_check_branch
      %239 = sbr.rel (0) target = $region25
    $region24: #{tpu_custom_call.1} parent=1 // pred_region
      %240 = dma.done [#allocation4], 512
    $region25: #{tpu_custom_call.1} parent=1 // pred_fallthru
      _
    %241 = vsyncpa [#allocation3], 1
    %242 = vsyncpa [#allocation4], 1

</llo_original>
